<compile_context>
chip_gen: v7x
topology: tpu7x:2x2x1
jax: 0.10.0
libtpu: 0.0.40
codegen_flags: <defaults>
</compile_context>

<pallas_src>
import jax
import jax.numpy as jnp
from jax.experimental import pallas as pl
from jax.experimental.pallas import tpu as pltpu


def _make_kernel(s_chunk):
    def kernel(x_ref, w_ref, b_ref, o_ref):
        # x_ref: (B, s_blk, CB)  input slice, channels in lanes
        # w_ref: (P, s_blk, CB)  channel-last weight slice for this block
        # b_ref: (1, P, CB)      channel-last bias for this channel block
        # o_ref: (B, P, CB)      output block, resident across the seq axis
        s_idx = pl.program_id(1)
        B, SB, CB = x_ref.shape
        P = w_ref.shape[0]

        # Initialize the resident output block with the bias on the first seq step.
        @pl.when(s_idx == 0)
        def _init():
            o_ref[...] = jnp.broadcast_to(b_ref[...], o_ref.shape).astype(o_ref.dtype)

        # VPU broadcast-multiply + reduce over the local seq slice, in small
        # chunks so the live (B, P, s_chunk, CB) intermediate stays bounded.
        acc = jnp.zeros((B, P, CB), jnp.float32)
        for s0 in range(0, SB, s_chunk):
            cur = min(s_chunk, SB - s0)
            xs = x_ref[:, s0:s0 + cur, :]              # (B, cur, CB)
            ws = w_ref[:, s0:s0 + cur, :]              # (P, cur, CB)
            acc = acc + jnp.sum(xs[:, None, :, :] * ws[None, :, :, :], axis=2)
        o_ref[...] += acc.astype(o_ref.dtype)

    return kernel


def _choose_s_blk(S):
    """Seq-block size: full S when small / not 8-aligned, otherwise the largest
    multiple-of-8 divisor of S giving >= 2 steps (weight DMA / compute overlap)."""
    if S % 8 != 0 or S < 32:
        return S
    cands = [d for d in range(8, S // 2 + 1, 8) if S % d == 0]
    return max(cands) if cands else S


def _choose_c_blk(C, B, P, s_blk, budget_bytes=12 * 1024 * 1024):
    """Largest channel block (multiple of 128 lanes, dividing C) whose
    double-buffered footprint fits the budget; full C if C isn't 128-aligned
    (full-extent block dims are exempt from the 128-lane rule, e.g. C=321)."""
    if C % 128 != 0:
        return C
    per_c_in = 4 * (B * s_blk + P * s_blk + P)   # x + w + bias bytes per channel (f32)
    per_c_out = 4 * B * P                        # resident output bytes per channel
    candidates = [blk for blk in range(128, C + 1, 128) if C % blk == 0]
    fitting = [blk for blk in candidates
               if blk * (2 * per_c_in + per_c_out) <= budget_bytes]
    if not fitting:
        return 128
    # Prefer keeping >= 2 channel steps so both TensorCores (v7x) get work.
    multi = [blk for blk in fitting if C // blk >= 2]
    return max(multi) if multi else max(fitting)


def per_channel_linear(x, weights, biases, *, c_blk=None, s_blk=None, s_chunk=None):
    """
    x:       (B, S, C)  float32 (native PyTorch layout, consumed as-is)
    weights: (C, P, S)  per-channel nn.Linear weights (PyTorch convention)
    biases:  (C, P)     per-channel nn.Linear biases
    returns: (B, P, C)
    """
    B, S, C = x.shape
    P = weights.shape[1]

    # One-time parameter relayout to channel-last (lane) layout; x / out need
    # NO relayout and are streamed in their native layout.
    w_cl = jnp.transpose(weights, (1, 2, 0))           # (P, S, C)
    b_cl = jnp.transpose(biases, (1, 0))[None]         # (1, P, C)

    if s_blk is None:
        s_blk = _choose_s_blk(S)
    if c_blk is None:
        c_blk = _choose_c_blk(C, B, P, s_blk)
    if s_chunk is None:
        s_chunk = min(8, s_blk)

    grid = (C // c_blk, S // s_blk)
    kernel = _make_kernel(s_chunk)

    return pl.pallas_call(
        kernel,
        out_shape=jax.ShapeDtypeStruct((B, P, C), x.dtype),
        grid_spec=pltpu.PrefetchScalarGridSpec(
            num_scalar_prefetch=0,
            grid=grid,
            in_specs=[
                pl.BlockSpec((B, s_blk, c_blk), lambda c, s: (0, s, c)),
                pl.BlockSpec((P, s_blk, c_blk), lambda c, s: (0, s, c)),
                pl.BlockSpec((1, P, c_blk), lambda c, s: (0, 0, c)),
            ],
            out_specs=pl.BlockSpec((B, P, c_blk), lambda c, s: (0, 0, c)),
        ),
        compiler_params=pltpu.CompilerParams(
            dimension_semantics=("parallel", "arbitrary"),
            vmem_limit_bytes=32 * 1024 * 1024,
        ),
    )(x, w_cl, b_cl)


def reference(x, weights, biases):
    # out[b, p, c] = sum_s weights[c, p, s] * x[b, s, c] + biases[c, p]
    return jnp.einsum("bsc,cps->bpc", x, weights) + jnp.transpose(biases, (1, 0))[None]


def _run_case(key, batch, seq_len, pred_len, channels):
    kx, kw, kb = jax.random.split(key, 3)
    x = jax.random.normal(kx, (batch, seq_len, channels), dtype=jnp.float32)
    bound = 1.0 / (seq_len ** 0.5)
    weights = jax.random.uniform(
        kw, (channels, pred_len, seq_len), minval=-bound, maxval=bound, dtype=jnp.float32
    )
    biases = jax.random.uniform(
        kb, (channels, pred_len), minval=-bound, maxval=bound, dtype=jnp.float32
    )
    out = jax.block_until_ready(per_channel_linear(x, weights, biases))
    ref = reference(x, weights, biases)
    assert out.shape == (batch, pred_len, channels), out.shape
    assert jnp.allclose(out, ref, atol=1e-5, rtol=1e-5), "mismatch vs reference"


if __name__ == "__main__":
    key = jax.random.PRNGKey(0)
    k1, k2 = jax.random.split(key)

    # Small shapes consistent with the module (individual=True per-channel Linear).
    # Case 1: 128-aligned channels -> 2 lane-dense channel blocks x 2 seq blocks.
    _run_case(k1, batch=2, seq_len=32, pred_len=8, channels=256)
    # Case 2: non-128-aligned channels (like the spec's enc_in=321) -> full-extent
    # channel block with multi-step seq accumulation.
    _run_case(k2, batch=1, seq_len=40, pred_len=8, channels=20)

    print("KERNEL_OK")
</pallas_src>

<mosaic_0001>
module attributes {stable_mosaic.version = 11 : i64} {
  func.func @kernel(%arg0: i32, %arg1: i32, %arg2: memref<2x16x128xf32, #tpu.memory_space<vmem>>, %arg3: memref<8x16x128xf32, #tpu.memory_space<vmem>>, %arg4: memref<1x8x128xf32, #tpu.memory_space<vmem>>, %arg5: memref<2x8x128xf32, #tpu.memory_space<vmem>>) attributes {dimension_semantics = [#tpu.dimension_semantics<parallel>, #tpu.dimension_semantics<arbitrary>], iteration_bounds = array<i64: 2, 2>, scalar_prefetch = 0 : i64, scratch_operands = 0 : i64, tpu.core_type = #tpu.core_type<tc>, window_params = [{transform_indices = @transform_0, window_bounds = array<i64: 2, 16, 128>}, {transform_indices = @transform_1, window_bounds = array<i64: 8, 16, 128>}, {transform_indices = @transform_2, window_bounds = array<i64: 1, 8, 128>}, {transform_indices = @transform_3, window_bounds = array<i64: 2, 8, 128>}]} {
    %c0_i32 = arith.constant 0 : i32
    %0 = arith.cmpi eq, %arg1, %c0_i32 : i32
    %1 = arith.extui %0 : i1 to i32
    %c0_i32_0 = arith.constant 0 : i32
    %2 = arith.cmpi ne, %1, %c0_i32_0 : i32
    scf.if %2 {
      %c0_19 = arith.constant 0 : index
      %c0_20 = arith.constant 0 : index
      %c0_21 = arith.constant 0 : index
      %25 = vector.load %arg4[%c0_19, %c0_20, %c0_21] : memref<1x8x128xf32, #tpu.memory_space<vmem>>, vector<1x8x128xf32>
      %26 = vector.shape_cast %25 : vector<1x8x128xf32> to vector<1x8x128xf32>
      %27 = vector.broadcast %26 : vector<1x8x128xf32> to vector<2x8x128xf32>
      %c0_22 = arith.constant 0 : index
      %c0_23 = arith.constant 0 : index
      %c0_24 = arith.constant 0 : index
      %28 = vector.load %arg5[%c0_22, %c0_23, %c0_24] : memref<2x8x128xf32, #tpu.memory_space<vmem>>, vector<2x8x128xf32>
      tpu.vector_store %arg5[%c0_22, %c0_23, %c0_24], %27 {strides = array<i32>} : memref<2x8x128xf32, #tpu.memory_space<vmem>>, vector<2x8x128xf32>,
    } else {
    }
    %cst = arith.constant 0.000000e+00 : f32
    %3 = vector.broadcast %cst : f32 to vector<2x8x128xf32>
    %c0 = arith.constant 0 : index
    %c0_1 = arith.constant 0 : index
    %c0_2 = arith.constant 0 : index
    %4 = vector.load %arg2[%c0, %c0_1, %c0_2] : memref<2x16x128xf32, #tpu.memory_space<vmem>>, vector<2x8x128xf32>
    %c0_3 = arith.constant 0 : index
    %c0_4 = arith.constant 0 : index
    %c0_5 = arith.constant 0 : index
    %5 = vector.load %arg3[%c0_3, %c0_4, %c0_5] : memref<8x16x128xf32, #tpu.memory_space<vmem>>, vector<8x8x128xf32>
    %6 = vector.shape_cast %4 : vector<2x8x128xf32> to vector<2x1x8x128xf32>
    %7 = vector.shape_cast %5 : vector<8x8x128xf32> to vector<1x8x8x128xf32>
    %8 = vector.broadcast %6 : vector<2x1x8x128xf32> to vector<2x8x8x128xf32>
    %9 = vector.broadcast %7 : vector<1x8x8x128xf32> to vector<2x8x8x128xf32>
    %10 = arith.mulf %8, %9 : vector<2x8x8x128xf32>
    %cst_6 = arith.constant dense<0.000000e+00> : vector<2x8x128xf32>
    %11 = vector.multi_reduction <add>, %10, %cst_6 [2] : vector<2x8x8x128xf32> to vector<2x8x128xf32>
    %12 = arith.addf %3, %11 : vector<2x8x128xf32>
    %c0_7 = arith.constant 0 : index
    %c8 = arith.constant 8 : index
    %c0_8 = arith.constant 0 : index
    %13 = vector.load %arg2[%c0_7, %c8, %c0_8] : memref<2x16x128xf32, #tpu.memory_space<vmem>>, vector<2x8x128xf32>
    %c0_9 = arith.constant 0 : index
    %c8_10 = arith.constant 8 : index
    %c0_11 = arith.constant 0 : index
    %14 = vector.load %arg3[%c0_9, %c8_10, %c0_11] : memref<8x16x128xf32, #tpu.memory_space<vmem>>, vector<8x8x128xf32>
    %15 = vector.shape_cast %13 : vector<2x8x128xf32> to vector<2x1x8x128xf32>
    %16 = vector.shape_cast %14 : vector<8x8x128xf32> to vector<1x8x8x128xf32>
    %17 = vector.broadcast %15 : vector<2x1x8x128xf32> to vector<2x8x8x128xf32>
    %18 = vector.broadcast %16 : vector<1x8x8x128xf32> to vector<2x8x8x128xf32>
    %19 = arith.mulf %17, %18 : vector<2x8x8x128xf32>
    %cst_12 = arith.constant dense<0.000000e+00> : vector<2x8x128xf32>
    %20 = vector.multi_reduction <add>, %19, %cst_12 [2] : vector<2x8x8x128xf32> to vector<2x8x128xf32>
    %21 = arith.addf %12, %20 : vector<2x8x128xf32>
    %c0_13 = arith.constant 0 : index
    %c0_14 = arith.constant 0 : index
    %c0_15 = arith.constant 0 : index
    %22 = vector.load %arg5[%c0_13, %c0_14, %c0_15] : memref<2x8x128xf32, #tpu.memory_space<vmem>>, vector<2x8x128xf32>
    %23 = arith.addf %22, %21 : vector<2x8x128xf32>
    %c0_16 = arith.constant 0 : index
    %c0_17 = arith.constant 0 : index
    %c0_18 = arith.constant 0 : index
    %24 = vector.load %arg5[%c0_16, %c0_17, %c0_18] : memref<2x8x128xf32, #tpu.memory_space<vmem>>, vector<2x8x128xf32>
    tpu.vector_store %arg5[%c0_16, %c0_17, %c0_18], %23 {strides = array<i32>} : memref<2x8x128xf32, #tpu.memory_space<vmem>>, vector<2x8x128xf32>,
    return
  }
  func.func @transform_0(%arg0: i32, %arg1: i32) -> (i32, i32, i32) {
    %c0_i32 = arith.constant 0 : i32
    %c0_i32_0 = arith.constant 0 : i32
    return %c0_i32, %arg1, %arg0 : i32, i32, i32
  }
  func.func @transform_1(%arg0: i32, %arg1: i32) -> (i32, i32, i32) {
    %c0_i32 = arith.constant 0 : i32
    %c0_i32_0 = arith.constant 0 : i32
    return %c0_i32, %arg1, %arg0 : i32, i32, i32
  }
  func.func @transform_2(%arg0: i32, %arg1: i32) -> (i32, i32, i32) {
    %c0_i32 = arith.constant 0 : i32
    %c0_i32_0 = arith.constant 0 : i32
    %c0_i32_1 = arith.constant 0 : i32
    return %c0_i32, %c0_i32_0, %arg0 : i32, i32, i32
  }
  func.func @transform_3(%arg0: i32, %arg1: i32) -> (i32, i32, i32) {
    %c0_i32 = arith.constant 0 : i32
    %c0_i32_0 = arith.constant 0 : i32
    %c0_i32_1 = arith.constant 0 : i32
    return %c0_i32, %c0_i32_0, %arg0 : i32, i32, i32
  }
}

</mosaic_0001>

<llo_original>
// kernel: tpu_custom_call.1
$region0: #{tpu_custom_call.1}
  #allocation0 [shape = 'u32[]', space=smem, size = 0x4, offset = 0x4, fixed_abs, tag = 'smem constant byte address 0x4 - core index']
  #allocation1 [shape = 'u32[144,128]{1,0:T(1,128)}', space=vmem, size = 0x12000, scoped, tag = 'internal scratch']
  #allocation9 [shape = 's32[]', space=sflag, size = 0x4, offset = 0, fixed_abs, tag = 'sflag constant byte address 0x0 - dummy sync flag']
  #allocation11 [shape = 's32[]', space=sflag, size = 0x4, offset = 0, fixed_abs, tag = 'sflag constant byte address 0x0 - dummy sync flag']
  %s0 = inlined_call_operand.hbm [shape: f32[2,32,256], index: 0, kind: input, shape index: {}]
  %s1 = inlined_call_operand.hbm [shape: f32[8,32,256], index: 1, kind: input, shape index: {}]
  %s2 = inlined_call_operand.hbm [shape: f32[1,8,256], index: 2, kind: input, shape index: {}]
  %s3 = inlined_call_operand.hbm [shape: f32[2,8,256], index: 3, kind: output, shape index: {}]
  %s4 = sld [smem:[#allocation0]]
  $region61: #{tpu_custom_call.1} parent=0
    _
  %s6 = ssub.s32 1, %s4
  %s7 = scalar_select 0, %s6, %s4
  $region1: #{tpu_custom_call.1} parent=0
    #allocation2 [shape = 'u8[32768]{0}', space=vmem, size = 0x8000, scoped, tag = 'input window, operand 0']
    #allocation3 [shape = 's32[2]{0}', space=sflag, size = 0x8, scoped, tag = 'scoped memory for tpu_custom_call.1']
    #allocation4 [shape = 's32[2]{0}', space=sflag, size = 0x8, scoped, tag = 'scoped memory for tpu_custom_call.1']
    #allocation5 [shape = 'u8[131072]{0}', space=vmem, size = 0x20000, scoped, tag = 'input window, operand 1']
    #allocation6 [shape = 's32[2]{0}', space=sflag, size = 0x8, scoped, tag = 'scoped memory for tpu_custom_call.1']
    #allocation7 [shape = 'u8[8192]{0}', space=vmem, size = 0x2000, scoped, tag = 'input window, operand 2']
    #allocation8 [shape = 'u8[16384]{0}', space=vmem, size = 0x4000, scoped, tag = 'output window, operand 0']
    %8 = vsyncpa [#allocation3], 0
    %s9 = scalar_lea.sflag [#allocation3], 1
    %10 = vsyncpa %s9, 0
    %11 = vsyncpa [#allocation6], 0
    %s12 = scalar_lea.sflag [#allocation6], 1
    %13 = vsyncpa %s12, 0
    %14 = vsyncpa [#allocation4], 0
    %s15 = scalar_lea.sflag [#allocation4], 1
    %16 = vsyncpa %s15, 0
    loop: start=0, step=1, limit=6
    $region2: #{tpu_custom_call.1} parent=1 // loop_pre_header
      _
    $region3: #{tpu_custom_call.1} parent=1 // loop_header
      %s18 = sphi 0, %s22
      %p19 = scmp.ge.s32.totalorder %s18, 6
      %s25 = sphi 0, %s37
      %s26 = sphi 0, %s33
      %s27 = sphi 0, %s25
      %s28 = sphi 0, %s26
      %s29 = sphi 0, %s27
      %s30 = sphi 0, %s28
      %s42 = sphi 0, %s44
      %s45 = sphi 0, %s42
      %s46 = sphi 0, %s45
      %s62 = sphi 0, %s46
      %s70 = sphi 0, %s72
      %s73 = sphi 0, %s70
      %s74 = sphi 0, %s73
      %s90 = sphi 0, %s74
      %s96 = sphi 0, %s98
      %s99 = sphi 0, %s96
      %s100 = sphi 0, %s99
      %s116 = sphi 0, %s100
      %s122 = sphi 0, %s124
      %s125 = sphi 0, %s122
      %s126 = sphi 0, %s125
      %s142 = sphi 0, %s126
    $region4: #{tpu_custom_call.1} parent=1 // loop_header_branch
      %21 = sbr.rel (%p19) target = $region8
    $region5: #{tpu_custom_call.1} parent=1 // loop_body
      %s23 = ssub.s32 %s18, 1
      %s24 = ssub.s32 %s18, 2
      %s31 = sadd.s32 1, %s26
      %p32 = scmp.ge.s32.totalorder %s31, 2
      %s33 = scalar_select %p32, 0, %s31
      %s34 = sadd.s32 1, %s25
      %s35 = scalar_select %p32, %s34, %s25
      %p36 = scmp.ge.s32.totalorder %s35, 2
      %s37 = scalar_select %p36, 0, %s35
      %s38 = ssub.s32 %s26, %s33
      %s39 = ssub.s32 %s25, %s37
      %s40 = sor.u32 %s38, %s39
      %p41 = scmp.eq.s32.totalorder %s40, 0
      %s43 = sadd.s32 %s42, 1
      %s44 = scalar_select %p41, %s42, %s43
      %p47 = pneg %p41
      %p48 = scmp.eq.s32.totalorder %s18, 3
      %p49 = por %p47, %p48
      %p50 = scmp.ne.s32.totalorder %s42, %s45
      %p51 = scmp.eq.s32.totalorder %s18, 0
      %p52 = por %p50, %p51
      %p53 = scmp.ne.s32.totalorder %s42, %s45
      %p54 = scmp.eq.s32.totalorder %s23, 3
      %p55 = por %p53, %p54
      %p56 = scmp.ne.s32.totalorder %s45, %s46
      %p57 = scmp.eq.s32.totalorder %s23, 0
      %p58 = por %p56, %p57
      %p59 = scmp.ne.s32.totalorder %s45, %s46
      %p60 = scmp.eq.s32.totalorder %s24, 3
      %p61 = por %p59, %p60
      %p63 = scmp.ne.s32.totalorder %s46, %s62
      %p64 = scmp.eq.s32.totalorder %s24, 0
      %p65 = por %p63, %p64
      %s66 = ssub.s32 %s26, %s33
      %s67 = ssub.s32 %s25, %s37
      %s68 = sor.u32 %s66, %s67
      %p69 = scmp.eq.s32.totalorder %s68, 0
      %s71 = sadd.s32 %s70, 1
      %s72 = scalar_select %p69, %s70, %s71
      %p75 = pneg %p69
      %p76 = scmp.eq.s32.totalorder %s18, 3
      %p77 = por %p75, %p76
      %p78 = scmp.ne.s32.totalorder %s70, %s73
      %p79 = scmp.eq.s32.totalorder %s18, 0
      %p80 = por %p78, %p79
      %p81 = scmp.ne.s32.totalorder %s70, %s73
      %p82 = scmp.eq.s32.totalorder %s23, 3
      %p83 = por %p81, %p82
      %p84 = scmp.ne.s32.totalorder %s73, %s74
      %p85 = scmp.eq.s32.totalorder %s23, 0
      %p86 = por %p84, %p85
      %p87 = scmp.ne.s32.totalorder %s73, %s74
      %p88 = scmp.eq.s32.totalorder %s24, 3
      %p89 = por %p87, %p88
      %p91 = scmp.ne.s32.totalorder %s74, %s90
      %p92 = scmp.eq.s32.totalorder %s24, 0
      %p93 = por %p91, %p92
      %s94 = ssub.s32 %s25, %s37
      %p95 = scmp.eq.s32.totalorder %s94, 0
      %s97 = sadd.s32 %s96, 1
      %s98 = scalar_select %p95, %s96, %s97
      %p101 = pneg %p95
      %p102 = scmp.eq.s32.totalorder %s18, 3
      %p103 = por %p101, %p102
      %p104 = scmp.ne.s32.totalorder %s96, %s99
      %p105 = scmp.eq.s32.totalorder %s18, 0
      %p106 = por %p104, %p105
      %p107 = scmp.ne.s32.totalorder %s96, %s99
      %p108 = scmp.eq.s32.totalorder %s23, 3
      %p109 = por %p107, %p108
      %p110 = scmp.ne.s32.totalorder %s99, %s100
      %p111 = scmp.eq.s32.totalorder %s23, 0
      %p112 = por %p110, %p111
      %p113 = scmp.ne.s32.totalorder %s99, %s100
      %p114 = scmp.eq.s32.totalorder %s24, 3
      %p115 = por %p113, %p114
      %p117 = scmp.ne.s32.totalorder %s100, %s116
      %p118 = scmp.eq.s32.totalorder %s24, 0
      %p119 = por %p117, %p118
      %s120 = ssub.s32 %s25, %s37
      %p121 = scmp.eq.s32.totalorder %s120, 0
      %s123 = sadd.s32 %s122, 1
      %s124 = scalar_select %p121, %s122, %s123
      %p127 = pneg %p121
      %p128 = scmp.eq.s32.totalorder %s18, 3
      %p129 = por %p127, %p128
      %p130 = scmp.ne.s32.totalorder %s122, %s125
      %p131 = scmp.eq.s32.totalorder %s18, 0
      %p132 = por %p130, %p131
      %p133 = scmp.ne.s32.totalorder %s122, %s125
      %p134 = scmp.eq.s32.totalorder %s23, 3
      %p135 = por %p133, %p134
      %p136 = scmp.ne.s32.totalorder %s125, %s126
      %p137 = scmp.eq.s32.totalorder %s23, 0
      %p138 = por %p136, %p137
      %p139 = scmp.ne.s32.totalorder %s125, %s126
      %p140 = scmp.eq.s32.totalorder %s24, 3
      %p141 = por %p139, %p140
      %p143 = scmp.ne.s32.totalorder %s126, %s142
      %p144 = scmp.eq.s32.totalorder %s24, 0
      %p145 = por %p143, %p144
      %p146 = scmp.le.s32.totalorder 1, %s18
      %p147 = scmp.lt.s32.totalorder %s18, 5
      %p148 = pnand %p146, %p147
      %p149 = pneg %p148
      // Predicated region
      $region9: #{tpu_custom_call.1} parent=5 // pred_check
        _
      $region10: #{tpu_custom_call.1} parent=5 // pred_check_branch
        %151 = sbr.rel (%p148) target = $region12
      $region11: #{tpu_custom_call.1} parent=5 // pred_region
        %s152 = ssub.s32 %s18, 1
      $region12: #{tpu_custom_call.1} parent=5 // pred_fallthru
        _
      %p153 = scmp.lt.s32.totalorder %s18, 4
      // Predicated region
      $region13: #{tpu_custom_call.1} parent=5 // pred_check
        %p154 = pneg %p153
      $region14: #{tpu_custom_call.1} parent=5 // pred_check_branch
        %156 = sbr.rel (%p154) target = $region16
      $region15: #{tpu_custom_call.1} parent=5 // pred_region
        // Predicated region
        $region17: #{tpu_custom_call.1} parent=15 // pred_check
          %p157 = pneg %p52
        $region18: #{tpu_custom_call.1} parent=15 // pred_check_branch
          %159 = sbr.rel (%p157) target = $region20
        $region19: #{tpu_custom_call.1} parent=15 // pred_region
          #allocation10 [shape = 'u32[6]{0}', space=smem, size = 0x18, scoped, tag = 'DMA stride descriptor']
          %s160 = sand.u32 %s42, 1
          %s161 = scalar_lea.sflag [#allocation3], %s160
          %s162 = sand.u32 %s42, 1
          %s163 = smul.addr %s162, 32
          %s164 = scalar_lea.vmem [#allocation2], %s163
          %s165 = smul.u32 2, %s26
          %s167 = ssub.s32 512, 512
          %168 = vsyncadd %s161, %s167
          %s169 = smul.addr %s165, 2
          %s170 = sadd.s32 %s25, %s169
          %s171 = smul.addr %s170, 128
          %s172 = scalar_lea.hbm %s0, %s171
          %s174 = sshll.u32 1, 14
          %s175 = sxor.u32 4294967295, %s174
          %s177 = sld [smem:[#allocation0]]
          %s178 = sadd.s32 2, %s177
          %s180 = sshll.u32 7, 26
          %s181 = sxor.u32 4294967295, %s180
          %s182 = sand.u32 0, %s181
          %s183 = sshll.u32 %s178, 26
          %s184 = sor.u32 %s182, %s183
          %s185 = sshll.u32 %s164, 4
          %s186 = int_to_ptr.vmem [resolvable:$true] %s185
          %192 = sst [smem:[#allocation10]] 1024
          %s193 = scalar_lea.smem [#allocation10], 1
          %194 = sst [smem:[%s193]] 256
          %s195 = scalar_lea.smem [#allocation10], 2
          %196 = sst [smem:[%s195]] 2
          %s197 = scalar_lea.smem [#allocation10], 3
          %198 = sst [smem:[%s197]] 256
          %s199 = scalar_lea.smem [#allocation10], 4
          %200 = sst [smem:[%s199]] 128
          %s201 = scalar_lea.smem [#allocation10], 5
          %202 = sst [smem:[%s201]] 8
          %204 = dma.general %s172, 512, %s186, %s161, [#allocation9], [#allocation10], %s184, 0
        $region20: #{tpu_custom_call.1} parent=15 // pred_fallthru
          _
        // Predicated region
        $region21: #{tpu_custom_call.1} parent=15 // pred_check
          %p205 = pneg %p80
        $region22: #{tpu_custom_call.1} parent=15 // pred_check_branch
          %207 = sbr.rel (%p205) target = $region24
        $region23: #{tpu_custom_call.1} parent=15 // pred_region
          #allocation12 [shape = 'u32[6]{0}', space=smem, size = 0x18, scoped, tag = 'DMA stride descriptor']
          %s208 = sand.u32 %s18, 1
          %s209 = scalar_lea.sflag [#allocation6], %s208
          %s210 = sand.u32 %s70, 1
          %s211 = smul.addr %s210, 128
          %s212 = scalar_lea.vmem [#allocation5], %s211
          %s213 = smul.u32 2, %s26
          %s215 = ssub.s32 2048, 2048
          %216 = vsyncadd %s209, %s215
          %s217 = smul.addr %s213, 2
          %s218 = sadd.s32 %s25, %s217
          %s219 = smul.addr %s218, 128
          %s220 = scalar_lea.hbm %s1, %s219
          %s222 = sshll.u32 1, 14
          %s223 = sxor.u32 4294967295, %s222
          %s225 = sld [smem:[#allocation0]]
          %s226 = sadd.s32 2, %s225
          %s228 = sshll.u32 7, 26
          %s229 = sxor.u32 4294967295, %s228
          %s230 = sand.u32 0, %s229
          %s231 = sshll.u32 %s226, 26
          %s232 = sor.u32 %s230, %s231
          %s233 = sshll.u32 %s212, 4
          %s234 = int_to_ptr.vmem [resolvable:$true] %s233
          %240 = sst [smem:[#allocation12]] 1024
          %s241 = scalar_lea.smem [#allocation12], 1
          %242 = sst [smem:[%s241]] 256
          %s243 = scalar_lea.smem [#allocation12], 2
          %244 = sst [smem:[%s243]] 2
          %s245 = scalar_lea.smem [#allocation12], 3
          %246 = sst [smem:[%s245]] 256
          %s247 = scalar_lea.smem [#allocation12], 4
          %248 = sst [smem:[%s247]] 128
          %s249 = scalar_lea.smem [#allocation12], 5
          %250 = sst [smem:[%s249]] 8
          %252 = dma.general %s220, 2048, %s234, %s209, [#allocation11], [#allocation12], %s232, 0
        $region24: #{tpu_custom_call.1} parent=15 // pred_fallthru
          _
        // Predicated region
        $region25: #{tpu_custom_call.1} parent=15 // pred_check
          %p253 = pneg %p106
        $region26: #{tpu_custom_call.1} parent=15 // pred_check_branch
          %255 = sbr.rel (%p253) target = $region28
        $region27: #{tpu_custom_call.1} parent=15 // pred_region
          %s256 = sand.u32 %s18, 1
          %s257 = scalar_lea.sflag [#allocation6], %s256
          %s258 = sand.u32 %s96, 1
          %s259 = smul.addr %s258, 8
          %s260 = scalar_lea.vmem [#allocation7], %s259
          %s262 = ssub.s32 128, 128
          %263 = vsyncadd %s257, %s262
          %s264 = smul.addr %s25, 128
          %s265 = scalar_lea.hbm %s2, %s264
          %s267 = sshll.u32 %s260, 4
          %s268 = int_to_ptr.vmem [resolvable:$true] %s267
          %270 = dma.hbm_to_vmem [thread:$0]  %s265, 128, %s268, %s257
        $region28: #{tpu_custom_call.1} parent=15 // pred_fallthru
          _
      $region16: #{tpu_custom_call.1} parent=5 // pred_fallthru
        _
      %p271 = scmp.le.s32.totalorder 1, %s18
      %p272 = scmp.lt.s32.totalorder %s18, 5
      %p273 = pnand %p271, %p272
      %p274 = pneg %p273
      // Predicated region
      $region29: #{tpu_custom_call.1} parent=5 // pred_check
        _
      $region30: #{tpu_custom_call.1} parent=5 // pred_check_branch
        %276 = sbr.rel (%p273) target = $region32
      $region31: #{tpu_custom_call.1} parent=5 // pred_region
        %s277 = ssub.s32 %s18, 1
        %s278 = sand.u32 %s45, 1
        %s279 = scalar_lea.sflag [#allocation3], %s278
        %s280 = sand.u32 %s45, 1
        %s281 = smul.addr %s280, 32
        %s282 = scalar_lea.vmem [#allocation2], %s281
        // Predicated region
        $region33: #{tpu_custom_call.1} parent=31 // pred_check
          %p283 = pneg %p58
        $region34: #{tpu_custom_call.1} parent=31 // pred_check_branch
          %285 = sbr.rel (%p283) target = $region36
        $region35: #{tpu_custom_call.1} parent=31 // pred_region
          %286 = dma.done %s279, 512
        $region36: #{tpu_custom_call.1} parent=31 // pred_fallthru
          _
        %s287 = sand.u32 %s23, 1
        %s288 = scalar_lea.sflag [#allocation6], %s287
        %s289 = sand.u32 %s73, 1
        %s290 = smul.addr %s289, 128
        %s291 = scalar_lea.vmem [#allocation5], %s290
        // Predicated region
        $region37: #{tpu_custom_call.1} parent=31 // pred_check
          %p292 = pneg %p86
        $region38: #{tpu_custom_call.1} parent=31 // pred_check_branch
          %294 = sbr.rel (%p292) target = $region40
        $region39: #{tpu_custom_call.1} parent=31 // pred_region
          %295 = dma.done %s288, 2048
        $region40: #{tpu_custom_call.1} parent=31 // pred_fallthru
          _
        %s296 = sand.u32 %s23, 1
        %s297 = scalar_lea.sflag [#allocation6], %s296
        %s298 = sand.u32 %s99, 1
        %s299 = smul.addr %s298, 8
        %s300 = scalar_lea.vmem [#allocation7], %s299
        // Predicated region
        $region41: #{tpu_custom_call.1} parent=31 // pred_check
          %p301 = pneg %p112
        $region42: #{tpu_custom_call.1} parent=31 // pred_check_branch
          %303 = sbr.rel (%p301) target = $region44
        $region43: #{tpu_custom_call.1} parent=31 // pred_region
          %304 = dma.done %s297, 128
        $region44: #{tpu_custom_call.1} parent=31 // pred_fallthru
          _
        %s305 = sand.u32 %s45, 1
        %s306 = scalar_lea.sflag [#allocation3], %s305
        %s307 = sand.u32 %s45, 1
        %s308 = smul.addr %s307, 32
        %s309 = scalar_lea.vmem [#allocation2], %s308
        %p310 = pneg %p58
        %p311 = pneg %p55
        %s312 = sand.u32 %s23, 1
        %s313 = scalar_lea.sflag [#allocation6], %s312
        %s314 = sand.u32 %s73, 1
        %s315 = smul.addr %s314, 128
        %s316 = scalar_lea.vmem [#allocation5], %s315
        %p317 = pneg %p86
        %p318 = pneg %p83
        %s319 = sand.u32 %s23, 1
        %s320 = scalar_lea.sflag [#allocation6], %s319
        %s321 = sand.u32 %s99, 1
        %s322 = smul.addr %s321, 8
        %s323 = scalar_lea.vmem [#allocation7], %s322
        %p324 = pneg %p112
        %p325 = pneg %p109
        %p326 = pneg %p138
        %p327 = pneg %p135
        %s328 = sand.u32 %s125, 1
        %s329 = scalar_lea.sflag [#allocation4], %s328
        %s330 = sand.u32 %s125, 1
        %s331 = smul.addr %s330, 16
        %s332 = scalar_lea.vmem [#allocation8], %s331
        %s333 = smul.u32 2, %s28
        %s334 = smul.u32 2, %s28
        %p335 = scmp.eq.s32.totalorder %s28, 0
        // Predicated region
        $region45: #{tpu_custom_call.1} parent=31 // pred_check
          %p336 = pneg %p335
        $region46: #{tpu_custom_call.1} parent=31 // pred_check_branch
          %338 = sbr.rel (%p336) target = $region48
        $region47: #{tpu_custom_call.1} parent=31 // pred_region
          %v339 = vld [vmem:[%s300] sm:$0xff]
          %340 = vst [vmem:[%s332] sm:$0xff] %v339
          %341 = vst [vmem:[%s332 + $0x8] sm:$0xff] %v339
        $region48: #{tpu_custom_call.1} parent=31 // pred_fallthru
          _
        %v342 = vld [vmem:[%s282] sm:$0xff]
        %v343 = vld [vmem:[%s282 + $0x10] sm:$0xff]
        %v344 = vld [vmem:[%s291] sm:$0xff]
        %v345 = vld [vmem:[%s291 + $0x10] sm:$0xff]
        %v346 = vld [vmem:[%s291 + $0x20] sm:$0xff]
        %v347 = vld [vmem:[%s291 + $0x30] sm:$0xff]
        %v348 = vld [vmem:[%s291 + $0x40] sm:$0xff]
        %v349 = vld [vmem:[%s291 + $0x50] sm:$0xff]
        %v350 = vld [vmem:[%s291 + $0x60] sm:$0xff]
        %v351 = vld [vmem:[%s291 + $0x70] sm:$0xff]
        %v352 = vmul.f32 %v342, %v344
        %v353 = vmul.f32 %v342, %v345
        %v354 = vmul.f32 %v342, %v346
        %v355 = vmul.f32 %v342, %v347
        %v356 = vmul.f32 %v342, %v348
        %v357 = vmul.f32 %v342, %v349
        %v358 = vmul.f32 %v342, %v350
        %v359 = vmul.f32 %v342, %v351
        %v360 = vmul.f32 %v343, %v344
        %v361 = vmul.f32 %v343, %v345
        %v362 = vmul.f32 %v343, %v346
        %v363 = vmul.f32 %v343, %v347
        %v364 = vmul.f32 %v343, %v348
        %v365 = vmul.f32 %v343, %v349
        %v366 = vmul.f32 %v343, %v350
        %v367 = vmul.f32 %v343, %v351
        %v368 = vrot.slane %v352, 4
        %v369 = vadd.f32 %v352, %v368
        %v370 = vrot.slane %v369, 2
        %v371 = vadd.f32 %v369, %v370
        %v372 = vrot.slane %v371, 1
        %v373 = vadd.f32 %v371, %v372
        %v374 = vrot.slane %v353, 4
        %v375 = vadd.f32 %v353, %v374
        %v376 = vrot.slane %v375, 2
        %v377 = vadd.f32 %v375, %v376
        %v378 = vrot.slane %v377, 1
        %v379 = vadd.f32 %v377, %v378
        %v380 = vrot.slane %v354, 4
        %v381 = vadd.f32 %v354, %v380
        %v382 = vrot.slane %v381, 2
        %v383 = vadd.f32 %v381, %v382
        %v384 = vrot.slane %v383, 1
        %v385 = vadd.f32 %v383, %v384
        %v386 = vrot.slane %v355, 4
        %v387 = vadd.f32 %v355, %v386
        %v388 = vrot.slane %v387, 2
        %v389 = vadd.f32 %v387, %v388
        %v390 = vrot.slane %v389, 1
        %v391 = vadd.f32 %v389, %v390
        %v392 = vrot.slane %v356, 4
        %v393 = vadd.f32 %v356, %v392
        %v394 = vrot.slane %v393, 2
        %v395 = vadd.f32 %v393, %v394
        %v396 = vrot.slane %v395, 1
        %v397 = vadd.f32 %v395, %v396
        %v398 = vrot.slane %v357, 4
        %v399 = vadd.f32 %v357, %v398
        %v400 = vrot.slane %v399, 2
        %v401 = vadd.f32 %v399, %v400
        %v402 = vrot.slane %v401, 1
        %v403 = vadd.f32 %v401, %v402
        %v404 = vrot.slane %v358, 4
        %v405 = vadd.f32 %v358, %v404
        %v406 = vrot.slane %v405, 2
        %v407 = vadd.f32 %v405, %v406
        %v408 = vrot.slane %v407, 1
        %v409 = vadd.f32 %v407, %v408
        %v410 = vrot.slane %v359, 4
        %v411 = vadd.f32 %v359, %v410
        %v412 = vrot.slane %v411, 2
        %v413 = vadd.f32 %v411, %v412
        %v414 = vrot.slane %v413, 1
        %v415 = vadd.f32 %v413, %v414
        %v416 = vrot.slane %v360, 4
        %v417 = vadd.f32 %v360, %v416
        %v418 = vrot.slane %v417, 2
        %v419 = vadd.f32 %v417, %v418
        %v420 = vrot.slane %v419, 1
        %v421 = vadd.f32 %v419, %v420
        %v422 = vrot.slane %v361, 4
        %v423 = vadd.f32 %v361, %v422
        %v424 = vrot.slane %v423, 2
        %v425 = vadd.f32 %v423, %v424
        %v426 = vrot.slane %v425, 1
        %v427 = vadd.f32 %v425, %v426
        %v428 = vrot.slane %v362, 4
        %v429 = vadd.f32 %v362, %v428
        %v430 = vrot.slane %v429, 2
        %v431 = vadd.f32 %v429, %v430
        %v432 = vrot.slane %v431, 1
        %v433 = vadd.f32 %v431, %v432
        %v434 = vrot.slane %v363, 4
        %v435 = vadd.f32 %v363, %v434
        %v436 = vrot.slane %v435, 2
        %v437 = vadd.f32 %v435, %v436
        %v438 = vrot.slane %v437, 1
        %v439 = vadd.f32 %v437, %v438
        %v440 = vrot.slane %v364, 4
        %v441 = vadd.f32 %v364, %v440
        %v442 = vrot.slane %v441, 2
        %v443 = vadd.f32 %v441, %v442
        %v444 = vrot.slane %v443, 1
        %v445 = vadd.f32 %v443, %v444
        %v446 = vrot.slane %v365, 4
        %v447 = vadd.f32 %v365, %v446
        %v448 = vrot.slane %v447, 2
        %v449 = vadd.f32 %v447, %v448
        %v450 = vrot.slane %v449, 1
        %v451 = vadd.f32 %v449, %v450
        %v452 = vrot.slane %v366, 4
        %v453 = vadd.f32 %v366, %v452
        %v454 = vrot.slane %v453, 2
        %v455 = vadd.f32 %v453, %v454
        %v456 = vrot.slane %v455, 1
        %v457 = vadd.f32 %v455, %v456
        %v458 = vrot.slane %v367, 4
        %v459 = vadd.f32 %v367, %v458
        %v460 = vrot.slane %v459, 2
        %v461 = vadd.f32 %v459, %v460
        %v462 = vrot.slane %v461, 1
        %v463 = vadd.f32 %v461, %v462
        %v464 = vadd.f32 %v373, 0.0
        %v465 = vadd.f32 %v379, 0.0
        %v466 = vadd.f32 %v385, 0.0
        %v467 = vadd.f32 %v391, 0.0
        %v468 = vadd.f32 %v397, 0.0
        %v469 = vadd.f32 %v403, 0.0
        %v470 = vadd.f32 %v409, 0.0
        %v471 = vadd.f32 %v415, 0.0
        %v472 = vadd.f32 %v421, 0.0
        %v473 = vadd.f32 %v427, 0.0
        %v474 = vadd.f32 %v433, 0.0
        %v475 = vadd.f32 %v439, 0.0
        %v476 = vadd.f32 %v445, 0.0
        %v477 = vadd.f32 %v451, 0.0
        %v478 = vadd.f32 %v457, 0.0
        %v479 = vadd.f32 %v463, 0.0
        %v480 = vld [vmem:[%s282 + $0x8] sm:$0xff]
        %v481 = vld [vmem:[%s282 + $0x18] sm:$0xff]
        %v482 = vld [vmem:[%s291 + $0x8] sm:$0xff]
        %v483 = vld [vmem:[%s291 + $0x18] sm:$0xff]
        %v484 = vld [vmem:[%s291 + $0x28] sm:$0xff]
        %v485 = vld [vmem:[%s291 + $0x38] sm:$0xff]
        %v486 = vld [vmem:[%s291 + $0x48] sm:$0xff]
        %v487 = vld [vmem:[%s291 + $0x58] sm:$0xff]
        %v488 = vld [vmem:[%s291 + $0x68] sm:$0xff]
        %v489 = vld [vmem:[%s291 + $0x78] sm:$0xff]
        %v490 = vmul.f32 %v480, %v482
        %v491 = vmul.f32 %v480, %v483
        %v492 = vmul.f32 %v480, %v484
        %v493 = vmul.f32 %v480, %v485
        %v494 = vmul.f32 %v480, %v486
        %v495 = vmul.f32 %v480, %v487
        %v496 = vmul.f32 %v480, %v488
        %v497 = vmul.f32 %v480, %v489
        %v498 = vmul.f32 %v481, %v482
        %v499 = vmul.f32 %v481, %v483
        %v500 = vmul.f32 %v481, %v484
        %v501 = vmul.f32 %v481, %v485
        %v502 = vmul.f32 %v481, %v486
        %v503 = vmul.f32 %v481, %v487
        %v504 = vmul.f32 %v481, %v488
        %v505 = vmul.f32 %v481, %v489
        %v506 = vrot.slane %v490, 4
        %v507 = vadd.f32 %v490, %v506
        %v508 = vrot.slane %v507, 2
        %v509 = vadd.f32 %v507, %v508
        %v510 = vrot.slane %v509, 1
        %v511 = vadd.f32 %v509, %v510
        %v512 = vrot.slane %v491, 4
        %v513 = vadd.f32 %v491, %v512
        %v514 = vrot.slane %v513, 2
        %v515 = vadd.f32 %v513, %v514
        %v516 = vrot.slane %v515, 1
        %v517 = vadd.f32 %v515, %v516
        %v518 = vrot.slane %v492, 4
        %v519 = vadd.f32 %v492, %v518
        %v520 = vrot.slane %v519, 2
        %v521 = vadd.f32 %v519, %v520
        %v522 = vrot.slane %v521, 1
        %v523 = vadd.f32 %v521, %v522
        %v524 = vrot.slane %v493, 4
        %v525 = vadd.f32 %v493, %v524
        %v526 = vrot.slane %v525, 2
        %v527 = vadd.f32 %v525, %v526
        %v528 = vrot.slane %v527, 1
        %v529 = vadd.f32 %v527, %v528
        %v530 = vrot.slane %v494, 4
        %v531 = vadd.f32 %v494, %v530
        %v532 = vrot.slane %v531, 2
        %v533 = vadd.f32 %v531, %v532
        %v534 = vrot.slane %v533, 1
        %v535 = vadd.f32 %v533, %v534
        %v536 = vrot.slane %v495, 4
        %v537 = vadd.f32 %v495, %v536
        %v538 = vrot.slane %v537, 2
        %v539 = vadd.f32 %v537, %v538
        %v540 = vrot.slane %v539, 1
        %v541 = vadd.f32 %v539, %v540
        %v542 = vrot.slane %v496, 4
        %v543 = vadd.f32 %v496, %v542
        %v544 = vrot.slane %v543, 2
        %v545 = vadd.f32 %v543, %v544
        %v546 = vrot.slane %v545, 1
        %v547 = vadd.f32 %v545, %v546
        %v548 = vrot.slane %v497, 4
        %v549 = vadd.f32 %v497, %v548
        %v550 = vrot.slane %v549, 2
        %v551 = vadd.f32 %v549, %v550
        %v552 = vrot.slane %v551, 1
        %v553 = vadd.f32 %v551, %v552
        %v554 = vrot.slane %v498, 4
        %v555 = vadd.f32 %v498, %v554
        %v556 = vrot.slane %v555, 2
        %v557 = vadd.f32 %v555, %v556
        %v558 = vrot.slane %v557, 1
        %v559 = vadd.f32 %v557, %v558
        %v560 = vrot.slane %v499, 4
        %v561 = vadd.f32 %v499, %v560
        %v562 = vrot.slane %v561, 2
        %v563 = vadd.f32 %v561, %v562
        %v564 = vrot.slane %v563, 1
        %v565 = vadd.f32 %v563, %v564
        %v566 = vrot.slane %v500, 4
        %v567 = vadd.f32 %v500, %v566
        %v568 = vrot.slane %v567, 2
        %v569 = vadd.f32 %v567, %v568
        %v570 = vrot.slane %v569, 1
        %v571 = vadd.f32 %v569, %v570
        %v572 = vrot.slane %v501, 4
        %v573 = vadd.f32 %v501, %v572
        %v574 = vrot.slane %v573, 2
        %v575 = vadd.f32 %v573, %v574
        %v576 = vrot.slane %v575, 1
        %v577 = vadd.f32 %v575, %v576
        %v578 = vrot.slane %v502, 4
        %v579 = vadd.f32 %v502, %v578
        %v580 = vrot.slane %v579, 2
        %v581 = vadd.f32 %v579, %v580
        %v582 = vrot.slane %v581, 1
        %v583 = vadd.f32 %v581, %v582
        %v584 = vrot.slane %v503, 4
        %v585 = vadd.f32 %v503, %v584
        %v586 = vrot.slane %v585, 2
        %v587 = vadd.f32 %v585, %v586
        %v588 = vrot.slane %v587, 1
        %v589 = vadd.f32 %v587, %v588
        %v590 = vrot.slane %v504, 4
        %v591 = vadd.f32 %v504, %v590
        %v592 = vrot.slane %v591, 2
        %v593 = vadd.f32 %v591, %v592
        %v594 = vrot.slane %v593, 1
        %v595 = vadd.f32 %v593, %v594
        %v596 = vrot.slane %v505, 4
        %v597 = vadd.f32 %v505, %v596
        %v598 = vrot.slane %v597, 2
        %v599 = vadd.f32 %v597, %v598
        %v600 = vrot.slane %v599, 1
        %v601 = vadd.f32 %v599, %v600
        %v602 = vadd.f32 %v464, %v511
        %v603 = vadd.f32 %v465, %v517
        %v604 = vadd.f32 %v466, %v523
        %v605 = vadd.f32 %v467, %v529
        %v606 = vadd.f32 %v468, %v535
        %v607 = vadd.f32 %v469, %v541
        %v608 = vadd.f32 %v470, %v547
        %v609 = vadd.f32 %v471, %v553
        %v610 = vadd.f32 %v472, %v559
        %v611 = vadd.f32 %v473, %v565
        %v612 = vadd.f32 %v474, %v571
        %v613 = vadd.f32 %v475, %v577
        %v614 = vadd.f32 %v476, %v583
        %v615 = vadd.f32 %v477, %v589
        %v616 = vadd.f32 %v478, %v595
        %v617 = vadd.f32 %v479, %v601
        %v618 = vld [vmem:[%s332] sm:$0xff]
        %v619 = vld [vmem:[%s332 + $0x8] sm:$0xff]
        %vm636 = vcmask 1041409
        %v637 = vsel %vm636, %v603, %v602
        %vm638 = vcmask 1042434
        %v639 = vsel %vm638, %v604, %v637
        %vm640 = vcmask 1043459
        %v641 = vsel %vm640, %v605, %v639
        %vm642 = vcmask 1044484
        %v643 = vsel %vm642, %v606, %v641
        %vm644 = vcmask 1045509
        %v645 = vsel %vm644, %v607, %v643
        %vm646 = vcmask 1046534
        %v647 = vsel %vm646, %v608, %v645
        %vm648 = vcmask 1047559
        %v649 = vsel %vm648, %v609, %v647
        %v650 = vsel %vm636, %v611, %v610
        %v651 = vsel %vm638, %v612, %v650
        %v652 = vsel %vm640, %v613, %v651
        %v653 = vsel %vm642, %v614, %v652
        %v654 = vsel %vm644, %v615, %v653
        %v655 = vsel %vm646, %v616, %v654
        %v656 = vsel %vm648, %v617, %v655
        %v659 = vadd.f32 %v618, %v649
        %v660 = vadd.f32 %v619, %v656
        %661 = vst [vmem:[%s332] sm:$0xff] %v659
        %662 = vst [vmem:[%s332 + $0x8] sm:$0xff] %v660
        %s663 = sand.u32 %s125, 1
        %s664 = scalar_lea.sflag [#allocation4], %s663
        %s665 = sand.u32 %s125, 1
        %s666 = smul.addr %s665, 16
        %s667 = scalar_lea.vmem [#allocation8], %s666
        // Predicated region
        $region49: #{tpu_custom_call.1} parent=31 // pred_check
          %p668 = pneg %p135
        $region50: #{tpu_custom_call.1} parent=31 // pred_check_branch
          %670 = sbr.rel (%p668) target = $region52
        $region51: #{tpu_custom_call.1} parent=31 // pred_region
          %s672 = ssub.s32 256, 256
          %673 = vsyncadd %s664, %s672
          %s674 = smul.addr %s27, 128
          %s675 = scalar_lea.hbm %s3, %s674
          %s676 = sshll.u32 %s667, 4
          %s677 = int_to_ptr.vmem [resolvable:$true] %s676
          %682 = dma.vmem_to_hbm [thread:$0]  %s677, 256, %s675, %s664, 128, 256, 8
        $region52: #{tpu_custom_call.1} parent=31 // pred_fallthru
          _
      $region32: #{tpu_custom_call.1} parent=5 // pred_fallthru
        _
      %p683 = scmp.le.s32.totalorder 2, %s18
      // Predicated region
      $region53: #{tpu_custom_call.1} parent=5 // pred_check
        %p684 = pneg %p683
      $region54: #{tpu_custom_call.1} parent=5 // pred_check_branch
        %686 = sbr.rel (%p684) target = $region56
      $region55: #{tpu_custom_call.1} parent=5 // pred_region
        %s687 = ssub.s32 %s18, 2
        // Predicated region
        $region57: #{tpu_custom_call.1} parent=55 // pred_check
          %p688 = pneg %p141
        $region58: #{tpu_custom_call.1} parent=55 // pred_check_branch
          %690 = sbr.rel (%p688) target = $region60
        $region59: #{tpu_custom_call.1} parent=55 // pred_region
          %s691 = sand.u32 %s126, 1
          %s692 = scalar_lea.sflag [#allocation4], %s691
          %s693 = sand.u32 %s126, 1
          %s694 = smul.addr %s693, 16
          %s695 = scalar_lea.vmem [#allocation8], %s694
          %696 = dma.done %s692, 256
        $region60: #{tpu_custom_call.1} parent=55 // pred_fallthru
          _
      $region56: #{tpu_custom_call.1} parent=5 // pred_fallthru
        _
    $region6: #{tpu_custom_call.1} parent=1 // loop_footer
      %s22 = sadd.s32 1, %s18
    $region7: #{tpu_custom_call.1} parent=1 // loop_footer_branch
      %17 = sbr.rel target = $region3
    $region8: #{tpu_custom_call.1} parent=1 // loop_exit
      _
    %697 = vsyncpa [#allocation3], 1
    %s698 = scalar_lea.sflag [#allocation3], 1
    %699 = vsyncpa %s698, 1
    %700 = vsyncpa [#allocation6], 1
    %s701 = scalar_lea.sflag [#allocation6], 1
    %702 = vsyncpa %s701, 1
    %703 = vsyncpa [#allocation4], 1
    %s704 = scalar_lea.sflag [#allocation4], 1
    %705 = vsyncpa %s704, 1

</llo_original>
